<compile_context>
chip_gen: v5e
topology: v5e:2x2
jax: 0.10.0
libtpu: 0.0.40
codegen_flags: <defaults>
</compile_context>

<pallas_src>
import functools
import math

import jax
import jax.numpy as jnp
from jax import lax
from jax.experimental import pallas as pl
from jax.experimental.pallas import tpu as pltpu

EPS = 1e-6
_ROW_TILE_MAX = 256   # 128-256 row tiles (good for v5e/v6e/v7x)


def _round_up(x, m):
    return ((x + m - 1) // m) * m


def _pad_rows(x2d, tile_max=_ROW_TILE_MAX):
    """Pad rows to a multiple of the chosen row tile; return (padded, tm)."""
    m = x2d.shape[0]
    tm = _round_up(m, 8) if m <= tile_max else tile_max
    mp = _round_up(m, tm)
    if mp != m:
        x2d = jnp.pad(x2d, ((0, mp - m), (0, 0)))
    return x2d, tm


def _col_tile(n, pref=512):
    """Lane-dense output/weight column tile (multiples of 128; prefer >=256)."""
    if n <= pref:
        return n
    for t in (512, 384, 256, 128):
        if n % t == 0:
            return t
    return n


def _rmsnorm_f32(x_f32, nw_f32):
    var = jnp.mean(x_f32 * x_f32, axis=-1, keepdims=True)
    return x_f32 * lax.rsqrt(var + EPS) * nw_f32


# --------------------------------------------------- fused RMSNorm + matmul
# Used both for (input_norm + QKV projection) and for (final_norm + unembed).
def _norm_matmul_kernel(x_ref, nw_ref, w_ref, o_ref):
    x = x_ref[...].astype(jnp.float32)
    xn = _rmsnorm_f32(x, nw_ref[...].astype(jnp.float32)).astype(w_ref.dtype)
    o_ref[...] = jnp.dot(xn, w_ref[...],
                         preferred_element_type=jnp.float32).astype(o_ref.dtype)


def norm_matmul_pallas(x2d, norm_w, w, out_dtype=None):
    m0, h = x2d.shape
    n = w.shape[1]
    out_dtype = out_dtype or x2d.dtype
    xp, tm = _pad_rows(x2d)
    mp = xp.shape[0]
    tn = _col_tile(n)
    out = pl.pallas_call(
        _norm_matmul_kernel,
        out_shape=jax.ShapeDtypeStruct((mp, n), out_dtype),
        grid=(mp // tm, n // tn),
        in_specs=[pl.BlockSpec((tm, h), lambda i, j: (i, 0)),
                  pl.BlockSpec((1, h), lambda i, j: (0, 0)),
                  pl.BlockSpec((h, tn), lambda i, j: (0, j))],
        out_specs=pl.BlockSpec((tm, tn), lambda i, j: (i, j)),
        compiler_params=pltpu.CompilerParams(
            dimension_semantics=("parallel", "parallel")),
    )(xp, norm_w.reshape(1, h), w)
    return out[:m0]


# --------------------------------------------------------------- plain linear
def _linear_kernel(x_ref, w_ref, o_ref):
    o_ref[...] = jnp.dot(x_ref[...], w_ref[...],
                         preferred_element_type=jnp.float32).astype(o_ref.dtype)


def linear_pallas(x2d, w):
    m0, k = x2d.shape
    n = w.shape[1]
    xp, tm = _pad_rows(x2d)
    mp = xp.shape[0]
    tn = _col_tile(n)
    out = pl.pallas_call(
        _linear_kernel,
        out_shape=jax.ShapeDtypeStruct((mp, n), x2d.dtype),
        grid=(mp // tm, n // tn),
        in_specs=[pl.BlockSpec((tm, k), lambda i, j: (i, 0)),
                  pl.BlockSpec((k, tn), lambda i, j: (0, j))],
        out_specs=pl.BlockSpec((tm, tn), lambda i, j: (i, j)),
        compiler_params=pltpu.CompilerParams(
            dimension_semantics=("parallel", "parallel")),
    )(xp, w)
    return out[:m0]


# ----------------------------------------------------------- attention core
# One grid step handles a (batch, head-group) pair; the block is lane-dense
# ([1, S, G*D] with G*D == 128 when D <= 128).  K is consumed un-transposed.
def _attn_kernel(q_ref, k_ref, v_ref, o_ref, *, scale, heads, head_dim):
    s_len = q_ref.shape[1]
    row = lax.broadcasted_iota(jnp.int32, (s_len, s_len), 0)
    col = lax.broadcasted_iota(jnp.int32, (s_len, s_len), 1)
    causal = col <= row
    outs = []
    for g in range(heads):                       # static, small loop over heads
        sl = slice(g * head_dim, (g + 1) * head_dim)
        q = q_ref[0, :, sl]
        k = k_ref[0, :, sl]
        v = v_ref[0, :, sl]
        # q @ k^T without materializing a transpose (contract last dims).
        s = lax.dot_general(q, k, (((1,), (1,)), ((), ())),
                            preferred_element_type=jnp.float32) * scale
        s = jnp.where(causal, s, -1e30)
        m = jnp.max(s, axis=-1, keepdims=True)
        p = jnp.exp(s - m)
        denom = jnp.sum(p, axis=-1, keepdims=True)
        p = p * pl.reciprocal(denom, approx=True)     # EUP, frees the VALU divide
        o = jnp.dot(p.astype(v.dtype), v, preferred_element_type=jnp.float32)
        outs.append(o.astype(o_ref.dtype))
    o_ref[0] = jnp.concatenate(outs, axis=-1)        # single lane-dense 128-wide store


def attention_pallas(q_bsh, k_bsh, v_bsh, n_heads, head_dim, scale):
    b, s, h = q_bsh.shape
    g = max(1, min(n_heads, 128 // max(1, head_dim)))
    while n_heads % g:
        g -= 1
    gd = g * head_dim
    kern = functools.partial(_attn_kernel, scale=scale, heads=g, head_dim=head_dim)
    spec = pl.BlockSpec((1, s, gd), lambda bi, hi: (bi, 0, hi))
    return pl.pallas_call(
        kern,
        out_shape=jax.ShapeDtypeStruct((b, s, h), q_bsh.dtype),
        grid=(b, n_heads // g),
        in_specs=[spec, spec, spec],
        out_specs=spec,
        compiler_params=pltpu.CompilerParams(
            dimension_semantics=("parallel", "parallel")),
    )(q_bsh, k_bsh, v_bsh)


# ------------------------------------------------- shared SwiGLU MLP tile body
def _mlp_tile(xn, wg_ref, wu_ref, wd_ref):
    g = jnp.dot(xn, wg_ref[...], preferred_element_type=jnp.float32)
    u = jnp.dot(xn, wu_ref[...], preferred_element_type=jnp.float32)
    hid = ((g * jax.nn.sigmoid(g)) * u).astype(wd_ref.dtype)
    return jnp.dot(hid, wd_ref[...], preferred_element_type=jnp.float32)


# --- main path: (hidden + attn_out) residual add + post-attn RMSNorm + SwiGLU MLP
#     + residual, all in one kernel.  Intermediate dim tiled with a VMEM f32
#     accumulator (the [M,H] residual never round-trips through HBM).
def _resid_norm_mlp_kernel(h_ref, a_ref, nw_ref, wg_ref, wu_ref, wd_ref,
                           o_ref, acc_ref):
    j = pl.program_id(1)
    r = h_ref[...].astype(jnp.float32) + a_ref[...].astype(jnp.float32)

    @pl.when(j == 0)
    def _():
        acc_ref[...] = r

    xn = _rmsnorm_f32(r, nw_ref[...].astype(jnp.float32)).astype(wg_ref.dtype)
    acc_ref[...] += _mlp_tile(xn, wg_ref, wu_ref, wd_ref)

    @pl.when(j == pl.num_programs(1) - 1)
    def _():
        o_ref[...] = acc_ref[...].astype(o_ref.dtype)


def resid_norm_mlp_pallas(hidden2d, attn2d, norm_w, wg, wu, wd):
    m0, h = hidden2d.shape
    inter = wg.shape[1]
    hp, tm = _pad_rows(hidden2d)
    mp = hp.shape[0]
    if attn2d.shape[0] != mp:
        attn2d = jnp.pad(attn2d, ((0, mp - m0), (0, 0)))
    ti = _col_tile(inter)
    out = pl.pallas_call(
        _resid_norm_mlp_kernel,
        out_shape=jax.ShapeDtypeStruct((mp, h), hidden2d.dtype),
        grid=(mp // tm, inter // ti),
        in_specs=[pl.BlockSpec((tm, h), lambda i, j: (i, 0)),
                  pl.BlockSpec((tm, h), lambda i, j: (i, 0)),
                  pl.BlockSpec((1, h), lambda i, j: (0, 0)),
                  pl.BlockSpec((h, ti), lambda i, j: (0, j)),
                  pl.BlockSpec((h, ti), lambda i, j: (0, j)),
                  pl.BlockSpec((ti, h), lambda i, j: (j, 0))],
        out_specs=pl.BlockSpec((tm, h), lambda i, j: (i, 0)),
        scratch_shapes=[pltpu.VMEM((tm, h), jnp.float32)],
        compiler_params=pltpu.CompilerParams(
            dimension_semantics=("parallel", "arbitrary")),
    )(hp, attn2d, norm_w.reshape(1, h), wg, wu, wd)
    return out[:m0]


# --- decode path: post-attn RMSNorm + SwiGLU MLP, NO residual (acc init = 0).
def _norm_mlp_kernel(x_ref, nw_ref, wg_ref, wu_ref, wd_ref, o_ref, acc_ref):
    j = pl.program_id(1)

    @pl.when(j == 0)
    def _():
        acc_ref[...] = jnp.zeros_like(acc_ref)

    x = x_ref[...].astype(jnp.float32)
    xn = _rmsnorm_f32(x, nw_ref[...].astype(jnp.float32)).astype(wg_ref.dtype)
    acc_ref[...] += _mlp_tile(xn, wg_ref, wu_ref, wd_ref)

    @pl.when(j == pl.num_programs(1) - 1)
    def _():
        o_ref[...] = acc_ref[...].astype(o_ref.dtype)


def norm_mlp_pallas(x2d, norm_w, wg, wu, wd):
    m0, h = x2d.shape
    inter = wg.shape[1]
    xp, tm = _pad_rows(x2d)
    mp = xp.shape[0]
    ti = _col_tile(inter)
    out = pl.pallas_call(
        _norm_mlp_kernel,
        out_shape=jax.ShapeDtypeStruct((mp, h), x2d.dtype),
        grid=(mp // tm, inter // ti),
        in_specs=[pl.BlockSpec((tm, h), lambda i, j: (i, 0)),
                  pl.BlockSpec((1, h), lambda i, j: (0, 0)),
                  pl.BlockSpec((h, ti), lambda i, j: (0, j)),
                  pl.BlockSpec((h, ti), lambda i, j: (0, j)),
                  pl.BlockSpec((ti, h), lambda i, j: (j, 0))],
        out_specs=pl.BlockSpec((tm, h), lambda i, j: (i, 0)),
        scratch_shapes=[pltpu.VMEM((tm, h), jnp.float32)],
        compiler_params=pltpu.CompilerParams(
            dimension_semantics=("parallel", "arbitrary")),
    )(xp, norm_w.reshape(1, h), wg, wu, wd)
    return out[:m0]


# -------------------- add_vector_after_position  (+ the extra "+vector"), row-tiled
def _masked_add_kernel(after_ref, x_ref, pos_ref, vec_ref, o_ref):
    # add_vector_after_position(x, v, pos, after) followed by "+ v"  (== x + (mask+1)*v)
    mask = (pos_ref[...] > after_ref[0]).astype(jnp.float32)          # [tm, 1]
    v = vec_ref[...].astype(jnp.float32)                              # [1, H]
    o_ref[...] = (x_ref[...].astype(jnp.float32) + (mask + 1.0) * v).astype(o_ref.dtype)


def masked_add_plus_vector_pallas(x_bsh, vec, position_ids, after):
    b, s, h = x_bsh.shape
    m0 = b * s
    x2 = x_bsh.reshape(m0, h)
    pos2 = position_ids.reshape(m0, 1).astype(jnp.int32)
    xp, tm = _pad_rows(x2)
    mp = xp.shape[0]
    if mp != m0:
        pos2 = jnp.pad(pos2, ((0, mp - m0), (0, 0)))
    after_arr = jnp.reshape(jnp.asarray(after, dtype=jnp.int32), (1,))
    out = pl.pallas_call(
        _masked_add_kernel,
        out_shape=jax.ShapeDtypeStruct((mp, h), x_bsh.dtype),
        grid=(mp // tm,),
        in_specs=[pl.BlockSpec(memory_space=pltpu.MemorySpace.SMEM),
                  pl.BlockSpec((tm, h), lambda i: (i, 0)),
                  pl.BlockSpec((tm, 1), lambda i: (i, 0)),
                  pl.BlockSpec((1, h), lambda i: (0, 0))],
        out_specs=pl.BlockSpec((tm, h), lambda i: (i, 0)),
        compiler_params=pltpu.CompilerParams(
            dimension_semantics=("parallel",)),
    )(after_arr, xp, pos2, vec.reshape(1, h))
    return out[:m0].reshape(b, s, h)


# =============================================================== synthetic LLaMA block
class PallasSelfAttn:
    def __init__(self, key, hidden, n_heads, dtype=jnp.float32):
        self.hidden = hidden
        self.n_heads = n_heads
        self.head_dim = hidden // n_heads
        kq, kk, kv, ko = jax.random.split(key, 4)
        sc = 1.0 / math.sqrt(hidden)
        wq = jax.random.normal(kq, (hidden, hidden), dtype) * sc
        wk = jax.random.normal(kk, (hidden, hidden), dtype) * sc
        wv = jax.random.normal(kv, (hidden, hidden), dtype) * sc
        self.wqkv = jnp.concatenate([wq, wk, wv], axis=1)        # fused [H, 3H]
        self.wo = jax.random.normal(ko, (hidden, hidden), dtype) * sc

    def __call__(self, x_bsh, norm_weight=None, position_ids=None, **kwargs):
        # TODO(synk): rotary position embedding omitted in this synthetic attention.
        b, s, h = x_bsh.shape
        x2 = x_bsh.reshape(b * s, h)
        if norm_weight is None:
            norm_weight = jnp.ones((h,), x_bsh.dtype)
        # fused input-RMSNorm + QKV projection (x read from HBM once)
        qkv = norm_matmul_pallas(x2, norm_weight, self.wqkv)     # [M, 3H]
        q = qkv[:, :h].reshape(b, s, h)
        k = qkv[:, h:2 * h].reshape(b, s, h)
        v = qkv[:, 2 * h:].reshape(b, s, h)
        # heads are contiguous lane slices of H -> no split/merge transposes needed
        o = attention_pallas(q, k, v, self.n_heads, self.head_dim,
                             1.0 / math.sqrt(self.head_dim))     # [B, S, H]
        out = linear_pallas(o.reshape(b * s, h), self.wo).reshape(b, s, h)
        return (out,)


class AttnWrapper:
    """Mirrors the PyTorch AttnWrapper: records the attention output."""
    def __init__(self, attn):
        self.attn = attn
        self.activations = None

    def __call__(self, *args, **kwargs):
        output = self.attn(*args, **kwargs)
        self.activations = output[0]
        return output


class PallasDecoderBlock:
    def __init__(self, key, hidden, n_heads, intermediate, dtype=jnp.float32):
        ka, kg, ku, kd = jax.random.split(key, 4)
        self.hidden = hidden
        self.input_layernorm_weight = jnp.ones((hidden,), dtype)
        self.post_attention_layernorm_weight = jnp.ones((hidden,), dtype)
        self.self_attn = PallasSelfAttn(ka, hidden, n_heads, dtype)
        s_h = 1.0 / math.sqrt(hidden)
        s_i = 1.0 / math.sqrt(intermediate)
        self.w_gate = jax.random.normal(kg, (hidden, intermediate), dtype) * s_h
        self.w_up = jax.random.normal(ku, (hidden, intermediate), dtype) * s_h
        self.w_down = jax.random.normal(kd, (intermediate, hidden), dtype) * s_i

    def mlp_norm(self, x2d):
        """post_attention_RMSNorm + SwiGLU MLP (no residual), fused."""
        return norm_mlp_pallas(x2d, self.post_attention_layernorm_weight,
                               self.w_gate, self.w_up, self.w_down)

    def __call__(self, hidden_states, position_ids=None):
        b, s, h = hidden_states.shape
        # input RMSNorm is fused into the QKV kernel inside self_attn
        attn_out = self.self_attn(hidden_states,
                                  norm_weight=self.input_layernorm_weight,
                                  position_ids=position_ids)[0]
        # (hidden + attn_out) residual, post-attn norm, SwiGLU MLP and final
        # residual all fused in one kernel -- the intermediate residual tensor
        # never touches HBM.
        h2 = resid_norm_mlp_pallas(hidden_states.reshape(b * s, h),
                                   attn_out.reshape(b * s, h),
                                   self.post_attention_layernorm_weight,
                                   self.w_gate, self.w_up, self.w_down)
        return (h2.reshape(b, s, h),)


# ============================================================= BlockOutputWrapper (JAX)
class BlockOutputWrapper:
    def __init__(self, block, unembed_matrix, norm_weight, tokenizer):
        self.block = block
        self.unembed_matrix = unembed_matrix      # [H, V]
        self.norm_weight = norm_weight            # [H]  (final RMSNorm weight)
        self.tokenizer = tokenizer
        self.block.self_attn = AttnWrapper(self.block.self_attn)
        self.post_attention_layernorm_weight = self.block.post_attention_layernorm_weight

        self.attn_out_unembedded = None
        self.intermediate_resid_unembedded = None
        self.mlp_out_unembedded = None
        self.block_output_unembedded = None
        self.activations = None
        self.add_activations = None
        self.after_position = None
        self.save_internal_decodings = False
        self.calc_dot_product_with = None
        self.dot_products = []

    def forward(self, *args, **kwargs):
        hidden_states = args[0]
        b, s, h = hidden_states.shape
        output = self.block(*args, **kwargs)
        # NOTE: PyTorch's in-place `matrix +=` would also mutate self.activations;
        # JAX arrays are immutable so self.activations keeps the pre-steering value.
        self.activations = output[0]

        if self.calc_dot_product_with is not None:
            last = self.activations[0, -1, :]
            decoded = norm_matmul_pallas(last.reshape(1, h), self.norm_weight,
                                         self.unembed_matrix,
                                         out_dtype=jnp.float32)[0]
            # TODO(synk): the host sync below is required to call the Python tokenizer
            # (torch.topk(...) + tokenizer.decode in the reference).
            top_token_id = int(jnp.argmax(decoded))
            top_token = self.tokenizer(top_token_id)
            dp = jnp.vdot(last.astype(jnp.float32),
                          self.calc_dot_product_with.astype(jnp.float32))
            self.dot_products.append((top_token, float(dp)))

        if self.add_activations is not None:
            position_ids = kwargs['position_ids']
            after = self.after_position
            if after is None:
                after = int(position_ids.min()) - 1
            # add_vector_after_position(...) followed by "+ add_activations", fused
            augmented = masked_add_plus_vector_pallas(
                output[0], self.add_activations, position_ids, after)
            output = (augmented,) + output[1:]

        if not self.save_internal_decodings:
            return output

        # -------- batched decode: ONE norm+unembed pass over all four tensors --------
        m = b * s
        attn_output = self.block.self_attn.activations
        attn_resid = attn_output + args[0]                # attn_output += args[0]
        mlp_out2d = self.block.mlp_norm(attn_resid.reshape(m, h))
        stacked = jnp.concatenate([output[0].reshape(m, h),
                                   attn_output.reshape(m, h),
                                   attn_resid.reshape(m, h),
                                   mlp_out2d], axis=0)    # [4M, H]
        decoded = norm_matmul_pallas(stacked, self.norm_weight, self.unembed_matrix,
                                     out_dtype=jnp.float32)       # [4M, V]
        v = decoded.shape[-1]
        d = decoded.reshape(4, b, s, v)
        self.block_output_unembedded = d[0]
        self.attn_out_unembedded = d[1]
        self.intermediate_resid_unembedded = d[2]
        self.mlp_out_unembedded = d[3]
        return output

    def add(self, activations):
        self.add_activations = activations

    def reset(self):
        self.add_activations = None
        self.activations = None
        self.block.self_attn.activations = None
        self.after_position = None
        self.calc_dot_product_with = None
        self.dot_products = []


if __name__ == "__main__":
    B, S, H, NH, I, V = 2, 8, 128, 4, 256, 256
    key = jax.random.PRNGKey(0)
    k_blk, k_x, k_add, k_dot, k_unembed = jax.random.split(key, 5)

    block = PallasDecoderBlock(k_blk, H, NH, I)
    unembed = jax.random.normal(k_unembed, (H, V), jnp.float32) / math.sqrt(H)
    norm_w = jnp.ones((H,), jnp.float32)
    tokenizer = lambda tid: f"<tok_{tid}>"

    wrapper = BlockOutputWrapper(block, unembed, norm_w, tokenizer)

    x = jax.random.normal(k_x, (B, S, H), jnp.float32)
    position_ids = jnp.broadcast_to(jnp.arange(S, dtype=jnp.int32), (B, S))

    wrapper.calc_dot_product_with = jax.random.normal(k_dot, (H,), jnp.float32)
    wrapper.add(0.1 * jax.random.normal(k_add, (H,), jnp.float32))
    wrapper.after_position = 3
    wrapper.save_internal_decodings = True

    output = wrapper.forward(x, position_ids=position_ids)

    jax.block_until_ready(output[0])
    jax.block_until_ready(wrapper.block_output_unembedded)
    jax.block_until_ready(wrapper.attn_out_unembedded)
    jax.block_until_ready(wrapper.intermediate_resid_unembedded)
    jax.block_until_ready(wrapper.mlp_out_unembedded)
    assert len(wrapper.dot_products) == 1
    print("KERNEL_OK")
</pallas_src>

<mosaic_0001>
module attributes {stable_mosaic.version = 11 : i64} {
  func.func @_norm_matmul_kernel(%arg0: i32, %arg1: i32, %arg2: memref<16x128xf32, #tpu.memory_space<vmem>>, %arg3: memref<1x128xf32, #tpu.memory_space<vmem>>, %arg4: memref<128x384xf32, #tpu.memory_space<vmem>>, %arg5: memref<16x384xf32, #tpu.memory_space<vmem>>) attributes {dimension_semantics = [#tpu.dimension_semantics<parallel>, #tpu.dimension_semantics<parallel>], iteration_bounds = array<i64: 1, 1>, scalar_prefetch = 0 : i64, scratch_operands = 0 : i64, tpu.core_type = #tpu.core_type<tc>, window_params = [{transform_indices = @transform_0, window_bounds = array<i64: 16, 128>}, {pipeline_mode = #tpu.pipeline_mode<synchronous>, transform_indices = @transform_1, window_bounds = array<i64: 1, 128>}, {transform_indices = @transform_2, window_bounds = array<i64: 128, 384>}, {transform_indices = @transform_3, window_bounds = array<i64: 16, 384>}]} {
    %c0 = arith.constant 0 : index
    %c0_0 = arith.constant 0 : index
    %0 = vector.load %arg2[%c0, %c0_0] : memref<16x128xf32, #tpu.memory_space<vmem>>, vector<16x128xf32>
    %c0_1 = arith.constant 0 : index
    %c0_2 = arith.constant 0 : index
    %1 = vector.load %arg3[%c0_1, %c0_2] : memref<1x128xf32, #tpu.memory_space<vmem>>, vector<1x128xf32>
    %2 = arith.mulf %0, %0 : vector<16x128xf32>
    %cst = arith.constant dense<0.000000e+00> : vector<16xf32>
    %3 = vector.multi_reduction <add>, %2, %cst [1] : vector<16x128xf32> to vector<16xf32>
    %4 = vector.shape_cast %3 : vector<16xf32> to vector<16x1xf32>
    %cst_3 = arith.constant 1.280000e+02 : f32
    %5 = vector.broadcast %cst_3 : f32 to vector<16x1xf32>
    %6 = arith.divf %4, %5 : vector<16x1xf32>
    %cst_4 = arith.constant 9.99999997E-7 : f32
    %7 = vector.broadcast %cst_4 : f32 to vector<16x1xf32>
    %8 = arith.addf %6, %7 : vector<16x1xf32>
    %9 = math.rsqrt %8 : vector<16x1xf32>
    %10 = vector.broadcast %9 : vector<16x1xf32> to vector<16x128xf32>
    %11 = arith.mulf %0, %10 : vector<16x128xf32>
    %12 = vector.broadcast %1 : vector<1x128xf32> to vector<16x128xf32>
    %13 = arith.mulf %11, %12 : vector<16x128xf32>
    %c0_5 = arith.constant 0 : index
    %c0_6 = arith.constant 0 : index
    %14 = vector.load %arg4[%c0_5, %c0_6] : memref<128x384xf32, #tpu.memory_space<vmem>>, vector<128x384xf32>
    %cst_7 = arith.constant dense<0.000000e+00> : vector<16x384xf32>
    %15 = tpu.matmul %13, %14, %cst_7 {dimension_numbers = #tpu.dot_dimension_numbers<[1], [0], [0], [1], [0, 0, 1, 1], [], []>} : vector<16x128xf32>, vector<128x384xf32>, vector<16x384xf32> -> vector<16x384xf32>
    %c0_8 = arith.constant 0 : index
    %c0_9 = arith.constant 0 : index
    %16 = vector.load %arg5[%c0_8, %c0_9] : memref<16x384xf32, #tpu.memory_space<vmem>>, vector<16x384xf32>
    tpu.vector_store %arg5[%c0_8, %c0_9], %15 {strides = array<i32>} : memref<16x384xf32, #tpu.memory_space<vmem>>, vector<16x384xf32>,
    return
  }
  func.func @transform_0(%arg0: i32, %arg1: i32) -> (i32, i32) {
    %c0_i32 = arith.constant 0 : i32
    %c0_i32_0 = arith.constant 0 : i32
    return %arg0, %c0_i32 : i32, i32
  }
  func.func @transform_1(%arg0: i32, %arg1: i32) -> (i32, i32) {
    %c0_i32 = arith.constant 0 : i32
    %c0_i32_0 = arith.constant 0 : i32
    %c0_i32_1 = arith.constant 0 : i32
    return %c0_i32, %c0_i32_0 : i32, i32
  }
  func.func @transform_2(%arg0: i32, %arg1: i32) -> (i32, i32) {
    %c0_i32 = arith.constant 0 : i32
    %c0_i32_0 = arith.constant 0 : i32
    return %c0_i32, %arg1 : i32, i32
  }
  func.func @transform_3(%arg0: i32, %arg1: i32) -> (i32, i32) {
    %c0_i32 = arith.constant 0 : i32
    return %arg0, %arg1 : i32, i32
  }
}

</mosaic_0001>

<llo_original>
// kernel: tpu_custom_call.1
$region0: #{tpu_custom_call.1}
  #allocation0 [shape = 'u32[]', space=smem, size = 0x4, offset = 0x4, fixed_abs, tag = 'smem constant byte address 0x4 - core index']
  #allocation1 [shape = 'u32[72,128]{1,0:T(1,128)}', space=vmem, size = 0x9000, scoped, tag = 'internal scratch']
  %s0 = inlined_call_operand.hbm [shape: f32[16,128], index: 0, kind: input, shape index: {}]
  %s1 = inlined_call_operand.hbm [shape: f32[1,128], index: 1, kind: input, shape index: {}]
  %s2 = inlined_call_operand.hbm [shape: f32[128,384], index: 2, kind: input, shape index: {}]
  %s3 = inlined_call_operand.hbm [shape: f32[16,384], index: 3, kind: output, shape index: {}]
  %s4 = sld [smem:[#allocation0]]
  $region34: #{tpu_custom_call.1} parent=0
    _
  %s6 = ssub.s32 1, %s4
  %s7 = scalar_select 0, %s6, %s4
  $region1: #{tpu_custom_call.1} parent=0
    #allocation2 [shape = 'u8[8192]{0}', space=vmem, size = 0x2000, scoped, tag = 'input window, operand 0, single buffered']
    #allocation3 [shape = 's32[1]{0}', space=sflag, size = 0x4, scoped, tag = 'scoped memory for tpu_custom_call.1']
    #allocation4 [shape = 's32[1]{0}', space=sflag, size = 0x4, scoped, tag = 'scoped memory for tpu_custom_call.1']
    #allocation5 [shape = 'u8[512]{0}', space=vmem, size = 0x400, scoped, tag = 'input window, operand 1, single buffered']
    #allocation6 [shape = 's32[1]{0}', space=sflag, size = 0x4, scoped, tag = 'scoped memory for tpu_custom_call.1']
    #allocation7 [shape = 'u8[196608]{0}', space=vmem, size = 0x30000, scoped, tag = 'input window, operand 2, single buffered']
    #allocation8 [shape = 'u8[24576]{0}', space=vmem, size = 0x6000, scoped, tag = 'output window, operand 0, single buffered']
    %8 = vsyncpa [#allocation3], 0
    %9 = vsyncpa [#allocation6], 0
    %10 = vsyncpa [#allocation4], 0
    // Predicated region
    $region2: #{tpu_custom_call.1} parent=1 // pred_check
      _
    $region3: #{tpu_custom_call.1} parent=1 // pred_check_branch
      %12 = sbr.rel (0) target = $region5
    $region4: #{tpu_custom_call.1} parent=1 // pred_region
      %14 = vsyncadd [#allocation3], 0
      %s15 = sshll.u32 %s0, 4
      %s16 = int_to_ptr.hbm [resolvable:$true] %s15
      %s17 = sshll.u32 [#allocation2], 4
      %s18 = int_to_ptr.vmem [resolvable:$true] %s17
      %23 = dma.hbm_to_vmem [thread:$0]  %s16, 256, %s18, [#allocation3], 128, 128, 8
    $region5: #{tpu_custom_call.1} parent=1 // pred_fallthru
      _
    // Predicated region
    $region6: #{tpu_custom_call.1} parent=1 // pred_check
      _
    $region7: #{tpu_custom_call.1} parent=1 // pred_check_branch
      %25 = sbr.rel (0) target = $region9
    $region8: #{tpu_custom_call.1} parent=1 // pred_region
      %27 = vsyncadd [#allocation6], 0
      %s29 = sshll.u32 %s1, 4
      %s30 = int_to_ptr.hbm [resolvable:$true] %s29
      %s31 = sshll.u32 [#allocation5], 4
      %s32 = int_to_ptr.vmem [resolvable:$true] %s31
      %34 = dma.hbm_to_vmem [thread:$0]  %s30, 16, %s32, [#allocation6]
    $region9: #{tpu_custom_call.1} parent=1 // pred_fallthru
      _
    // Predicated region
    $region10: #{tpu_custom_call.1} parent=1 // pred_check
      _
    $region11: #{tpu_custom_call.1} parent=1 // pred_check_branch
      %36 = sbr.rel (0) target = $region13
    $region12: #{tpu_custom_call.1} parent=1 // pred_region
      %38 = vsyncadd [#allocation6], 0
      %s39 = sshll.u32 %s2, 4
      %s40 = int_to_ptr.hbm [resolvable:$true] %s39
      %s41 = sshll.u32 [#allocation7], 4
      %s42 = int_to_ptr.vmem [resolvable:$true] %s41
      %47 = dma.hbm_to_vmem [thread:$0]  %s40, 6144, %s42, [#allocation6], 384, 384, 24
    $region13: #{tpu_custom_call.1} parent=1 // pred_fallthru
      _
    // Predicated region
    $region14: #{tpu_custom_call.1} parent=1 // pred_check
      _
    $region15: #{tpu_custom_call.1} parent=1 // pred_check_branch
      %49 = sbr.rel (0) target = $region17
    $region16: #{tpu_custom_call.1} parent=1 // pred_region
      %51 = dma.done [#allocation3], 256
    $region17: #{tpu_custom_call.1} parent=1 // pred_fallthru
      _
    // Predicated region
    $region18: #{tpu_custom_call.1} parent=1 // pred_check
      _
    $region19: #{tpu_custom_call.1} parent=1 // pred_check_branch
      %53 = sbr.rel (0) target = $region21
    $region20: #{tpu_custom_call.1} parent=1 // pred_region
      %55 = dma.done [#allocation6], 16
    $region21: #{tpu_custom_call.1} parent=1 // pred_fallthru
      _
    // Predicated region
    $region22: #{tpu_custom_call.1} parent=1 // pred_check
      _
    $region23: #{tpu_custom_call.1} parent=1 // pred_check_branch
      %57 = sbr.rel (0) target = $region25
    $region24: #{tpu_custom_call.1} parent=1 // pred_region
      %59 = dma.done [#allocation6], 6144
    $region25: #{tpu_custom_call.1} parent=1 // pred_fallthru
      _
    %v60 = vld [vmem:[#allocation2] sm:$0xff]
    %v61 = vld [vmem:[#allocation2 + $0x8] sm:$0xff]
    %v62 = vld [vmem:[#allocation5] sm:$0x1]
    %v63 = vmul.f32 %v60, %v60
    %v64 = vmul.f32 %v61, %v61
    %65 = vadd.xlane.f32.xlu0 %v63
    %v66 = vpop.xlane.xlu0 %65
    %67 = vadd.xlane.f32.xlu0 %v64
    %v68 = vpop.xlane.xlu0 %67
    %v69 = vrcp.pop 128.0
    %v70 = vmul.f32 128.0, %v69
    %v71 = vsub.f32 1.0, %v70
    %v72 = vmul.f32 %v69, %v71
    %v73 = vadd.f32 %v69, %v72
    %vm74 = vweird.f32 %v69
    %v75 = vsel %vm74, %v69, %v73
    %v76 = vmul.f32 %v66, %v75
    %v77 = vmul.f32 %v68, %v75
    %v78 = vadd.f32 %v76, 1e-06
    %v79 = vadd.f32 %v77, 1e-06
    %v80 = vrsqrt.pop %v78
    %v81 = vmul.f32 %v80, %v78
    %v82 = vmul.f32 %v81, %v80
    %v83 = vmul.f32 0.5, %v82
    %v84 = vsub.f32 1.5, %v83
    %v85 = vmul.f32 %v80, %v84
    %vm86 = vweird.f32 %v78
    %vm87 = vweird.f32 %v80
    %vm88 = vmor %vm86, %vm87
    %v89 = vsel %vm88, %v80, %v85
    %v90 = vrsqrt.pop %v79
    %v91 = vmul.f32 %v90, %v79
    %v92 = vmul.f32 %v91, %v90
    %v93 = vmul.f32 0.5, %v92
    %v94 = vsub.f32 1.5, %v93
    %v95 = vmul.f32 %v90, %v94
    %vm96 = vweird.f32 %v79
    %vm97 = vweird.f32 %v90
    %vm98 = vmor %vm96, %vm97
    %v99 = vsel %vm98, %v90, %v95
    %v100 = vmul.f32 %v60, %v89
    %v101 = vmul.f32 %v61, %v99
    %v103 = vperm.slane %v62, 0
    %v105 = vmul.f32 %v100, %v103
    %v106 = vmul.f32 %v101, %v103
    %v107 = vld [vmem:[#allocation7] sm:$0xff]
    %v108 = vld [vmem:[#allocation7 + $0x8] sm:$0xff]
    %v109 = vld [vmem:[#allocation7 + $0x10] sm:$0xff]
    %v110 = vld [vmem:[#allocation7 + $0x18] sm:$0xff]
    %v111 = vld [vmem:[#allocation7 + $0x20] sm:$0xff]
    %v112 = vld [vmem:[#allocation7 + $0x28] sm:$0xff]
    %v113 = vld [vmem:[#allocation7 + $0x30] sm:$0xff]
    %v114 = vld [vmem:[#allocation7 + $0x38] sm:$0xff]
    %v115 = vld [vmem:[#allocation7 + $0x40] sm:$0xff]
    %v116 = vld [vmem:[#allocation7 + $0x48] sm:$0xff]
    %v117 = vld [vmem:[#allocation7 + $0x50] sm:$0xff]
    %v118 = vld [vmem:[#allocation7 + $0x58] sm:$0xff]
    %v119 = vld [vmem:[#allocation7 + $0x60] sm:$0xff]
    %v120 = vld [vmem:[#allocation7 + $0x68] sm:$0xff]
    %v121 = vld [vmem:[#allocation7 + $0x70] sm:$0xff]
    %v122 = vld [vmem:[#allocation7 + $0x78] sm:$0xff]
    %v123 = vld [vmem:[#allocation7 + $0x80] sm:$0xff]
    %v124 = vld [vmem:[#allocation7 + $0x88] sm:$0xff]
    %v125 = vld [vmem:[#allocation7 + $0x90] sm:$0xff]
    %v126 = vld [vmem:[#allocation7 + $0x98] sm:$0xff]
    %v127 = vld [vmem:[#allocation7 + $0xa0] sm:$0xff]
    %v128 = vld [vmem:[#allocation7 + $0xa8] sm:$0xff]
    %v129 = vld [vmem:[#allocation7 + $0xb0] sm:$0xff]
    %v130 = vld [vmem:[#allocation7 + $0xb8] sm:$0xff]
    %v131 = vld [vmem:[#allocation7 + $0xc0] sm:$0xff]
    %v132 = vld [vmem:[#allocation7 + $0xc8] sm:$0xff]
    %v133 = vld [vmem:[#allocation7 + $0xd0] sm:$0xff]
    %v134 = vld [vmem:[#allocation7 + $0xd8] sm:$0xff]
    %v135 = vld [vmem:[#allocation7 + $0xe0] sm:$0xff]
    %v136 = vld [vmem:[#allocation7 + $0xe8] sm:$0xff]
    %v137 = vld [vmem:[#allocation7 + $0xf0] sm:$0xff]
    %v138 = vld [vmem:[#allocation7 + $0xf8] sm:$0xff]
    %v139 = vld [vmem:[#allocation7 + $0x100] sm:$0xff]
    %v140 = vld [vmem:[#allocation7 + $0x108] sm:$0xff]
    %v141 = vld [vmem:[#allocation7 + $0x110] sm:$0xff]
    %v142 = vld [vmem:[#allocation7 + $0x118] sm:$0xff]
    %v143 = vld [vmem:[#allocation7 + $0x120] sm:$0xff]
    %v144 = vld [vmem:[#allocation7 + $0x128] sm:$0xff]
    %v145 = vld [vmem:[#allocation7 + $0x130] sm:$0xff]
    %v146 = vld [vmem:[#allocation7 + $0x138] sm:$0xff]
    %v147 = vld [vmem:[#allocation7 + $0x140] sm:$0xff]
    %v148 = vld [vmem:[#allocation7 + $0x148] sm:$0xff]
    %v149 = vld [vmem:[#allocation7 + $0x150] sm:$0xff]
    %v150 = vld [vmem:[#allocation7 + $0x158] sm:$0xff]
    %v151 = vld [vmem:[#allocation7 + $0x160] sm:$0xff]
    %v152 = vld [vmem:[#allocation7 + $0x168] sm:$0xff]
    %v153 = vld [vmem:[#allocation7 + $0x170] sm:$0xff]
    %v154 = vld [vmem:[#allocation7 + $0x178] sm:$0xff]
    %155 = vmatpush.msra.mxu0 %v152
    %156 = vmatpush.msra.mxu0 %v149
    %157 = vmatpush.msra.mxu0 %v146
    %158 = vmatpush.msra.mxu0 %v143
    %159 = vmatpush.msra.mxu0 %v140
    %160 = vmatpush.msra.mxu0 %v137
    %161 = vmatpush.msra.mxu0 %v134
    %162 = vmatpush.msra.mxu0 %v131
    %163 = vmatpush.msra.mxu0 %v128
    %164 = vmatpush.msra.mxu0 %v125
    %165 = vmatpush.msra.mxu0 %v122
    %166 = vmatpush.msra.mxu0 %v119
    %167 = vmatpush.msra.mxu0 %v116
    %168 = vmatpush.msra.mxu0 %v113
    %169 = vmatpush.msra.mxu0 %v110
    %170 = vmatpush.msra.mxu0 %v107
    %171 = vmatmul.f32.gmra.mxu0 %v105
    %v172 = vpop.f32.mrf.mxu0
    %v173 = vadd.f32 0.0, %v172
    %174 = vmatmul.f32.gmra.mxu0 %v106
    %v175 = vpop.f32.mrf.mxu0
    %v176 = vadd.f32 0.0, %v175
    %177 = vdwg.mxu0
    %178 = vmatpush.msra.mxu0 %v153
    %179 = vmatpush.msra.mxu0 %v150
    %180 = vmatpush.msra.mxu0 %v147
    %181 = vmatpush.msra.mxu0 %v144
    %182 = vmatpush.msra.mxu0 %v141
    %183 = vmatpush.msra.mxu0 %v138
    %184 = vmatpush.msra.mxu0 %v135
    %185 = vmatpush.msra.mxu0 %v132
    %186 = vmatpush.msra.mxu0 %v129
    %187 = vmatpush.msra.mxu0 %v126
    %188 = vmatpush.msra.mxu0 %v123
    %189 = vmatpush.msra.mxu0 %v120
    %190 = vmatpush.msra.mxu0 %v117
    %191 = vmatpush.msra.mxu0 %v114
    %192 = vmatpush.msra.mxu0 %v111
    %193 = vmatpush.msra.mxu0 %v108
    %194 = vmatmul.f32.gmra.mxu0 %v105
    %v195 = vpop.f32.mrf.mxu0
    %v196 = vadd.f32 0.0, %v195
    %197 = vmatmul.f32.gmra.mxu0 %v106
    %v198 = vpop.f32.mrf.mxu0
    %v199 = vadd.f32 0.0, %v198
    %200 = vdwg.mxu0
    %201 = vmatpush.msra.mxu0 %v154
    %202 = vmatpush.msra.mxu0 %v151
    %203 = vmatpush.msra.mxu0 %v148
    %204 = vmatpush.msra.mxu0 %v145
    %205 = vmatpush.msra.mxu0 %v142
    %206 = vmatpush.msra.mxu0 %v139
    %207 = vmatpush.msra.mxu0 %v136
    %208 = vmatpush.msra.mxu0 %v133
    %209 = vmatpush.msra.mxu0 %v130
    %210 = vmatpush.msra.mxu0 %v127
    %211 = vmatpush.msra.mxu0 %v124
    %212 = vmatpush.msra.mxu0 %v121
    %213 = vmatpush.msra.mxu0 %v118
    %214 = vmatpush.msra.mxu0 %v115
    %215 = vmatpush.msra.mxu0 %v112
    %216 = vmatpush.msra.mxu0 %v109
    %217 = vmatmul.f32.gmra.mxu0 %v105
    %v218 = vpop.f32.mrf.mxu0
    %v219 = vadd.f32 0.0, %v218
    %220 = vmatmul.f32.gmra.mxu0 %v106
    %v221 = vpop.f32.mrf.mxu0
    %v222 = vadd.f32 0.0, %v221
    %223 = vdwg.mxu0
    %224 = vst [vmem:[#allocation8] sm:$0xff] %v173
    %225 = vst [vmem:[#allocation8 + $0x8] sm:$0xff] %v196
    %226 = vst [vmem:[#allocation8 + $0x10] sm:$0xff] %v219
    %227 = vst [vmem:[#allocation8 + $0x18] sm:$0xff] %v176
    %228 = vst [vmem:[#allocation8 + $0x20] sm:$0xff] %v199
    %229 = vst [vmem:[#allocation8 + $0x28] sm:$0xff] %v222
    // Predicated region
    $region26: #{tpu_custom_call.1} parent=1 // pred_check
      _
    $region27: #{tpu_custom_call.1} parent=1 // pred_check_branch
      %231 = sbr.rel (0) target = $region29
    $region28: #{tpu_custom_call.1} parent=1 // pred_region
      %233 = vsyncadd [#allocation4], 0
      %s234 = sshll.u32 [#allocation8], 4
      %s235 = int_to_ptr.vmem [resolvable:$true] %s234
      %s236 = sshll.u32 %s3, 4
      %s237 = int_to_ptr.hbm [resolvable:$true] %s236
      %242 = dma.vmem_to_hbm [thread:$0]  %s235, 768, %s237, [#allocation4], 384, 384, 24
    $region29: #{tpu_custom_call.1} parent=1 // pred_fallthru
      _
    // Predicated region
    $region30: #{tpu_custom_call.1} parent=1 // pred_check
      _
    $region31: #{tpu_custom_call.1} parent=1 // pred_check_branch
      %244 = sbr.rel (0) target = $region33
    $region32: #{tpu_custom_call.1} parent=1 // pred_region
      %246 = dma.done [#allocation4], 768
    $region33: #{tpu_custom_call.1} parent=1 // pred_fallthru
      _
    %247 = vsyncpa [#allocation3], 1
    %248 = vsyncpa [#allocation6], 1
    %249 = vsyncpa [#allocation4], 1

</llo_original>
